<compile_context>
chip_gen: v7x
topology: tpu7x:2x2x1
jax: 0.10.0
libtpu: 0.0.40
codegen_flags: <defaults>
</compile_context>

<pallas_src>
import jax
import jax.numpy as jnp
from jax.experimental import pallas as pl
from jax.experimental.pallas import tpu as pltpu

_MIB = 1 << 20


def _round_up(x: int, m: int) -> int:
    return ((x + m - 1) // m) * m


def _cdiv(a: int, b: int) -> int:
    return -(-a // b)


def _sublane(dtype) -> int:
    bits = jnp.dtype(dtype).itemsize * 8
    if bits >= 32:
        return 8
    if bits == 16:
        return 16
    return 32


def _vmem_capacity_bytes() -> int:
    try:
        info = pltpu.get_tpu_info()
        cap = getattr(info, "vmem_capacity_bytes", None)
        if cap:
            return int(cap)
    except Exception:
        pass
    return 64 * _MIB  # conservative (v7x per-core); v5e/v6e have 128 MiB


def _choose_tile_b(B: int, sub: int) -> int:
    """Batch tile: minimize edge waste; >=2 tiles when reasonable (v7x dual-TC)."""
    if B <= 2 * sub or B <= 128:
        return _round_up(B, sub)
    if B <= 512:
        return _round_up(_cdiv(B, 2), sub)          # two tiles -> both TCs busy
    cands = [c for c in (512, 256, 128) if c % sub == 0] or [_round_up(128, sub)]
    return min(cands, key=lambda c: (_cdiv(B, c) * c - B, -c))


# ---------------- Path A: resident-weight kernel (single K step) ----------------
def _rezero_resident_kernel(x_ref, wt_ref, b_ref, a_ref, o_ref):
    x = x_ref[...]
    y = jnp.dot(x, wt_ref[...], preferred_element_type=jnp.float32)
    y = y + b_ref[...].astype(jnp.float32)
    y = jnp.maximum(y, 0.01 * y)                    # LeakyReLU(0.01)
    y = y * a_ref[...].astype(jnp.float32)
    o_ref[...] = (y + x.astype(jnp.float32)).astype(o_ref.dtype)


# ---------------- Path B: (M, N, K)-tiled kernel with f32 accumulator ------------
def _rezero_tiled_kernel(x_ref, xres_ref, wt_ref, b_ref, a_ref, o_ref, acc_ref):
    k = pl.program_id(2)

    @pl.when(k == 0)
    def _init():
        acc_ref[...] = jnp.zeros_like(acc_ref)

    acc_ref[...] += jnp.dot(x_ref[...], wt_ref[...],
                            preferred_element_type=jnp.float32)

    @pl.when(k == pl.num_programs(2) - 1)
    def _finalize():
        y = acc_ref[...] + b_ref[...].astype(jnp.float32)
        y = jnp.maximum(y, 0.01 * y)                # LeakyReLU(0.01)
        y = y * a_ref[...].astype(jnp.float32)
        o_ref[...] = (y + xres_ref[...].astype(jnp.float32)).astype(o_ref.dtype)


def rezero_block(x, w, b, alpha, *, force_tiled=False):
    """ReZero forward: leaky_relu(x @ w.T + b) * alpha + x.

    x: (B, D); w: (D, D) torch (out, in) layout; b: (D,); alpha: (1, D).
    """
    B, D = x.shape
    assert w.shape == (D, D) and b.shape == (D,) and alpha.shape == (1, D)

    # One-time (in, out)-layout weight: kernel does a plain x @ w_t matmul.
    w_t = jnp.swapaxes(w, 0, 1)
    b2 = b.reshape(1, D)

    sub = _sublane(x.dtype)
    x_itemsize = jnp.dtype(x.dtype).itemsize
    w_itemsize = jnp.dtype(w.dtype).itemsize
    vmem_cap = _vmem_capacity_bytes()

    tile_b = _choose_tile_b(B, sub)

    # ------------------- Path A: resident weight -------------------
    w_vmem = 2 * D * D * w_itemsize                 # default double-buffered

    def _fits_resident(tb):
        # W + double-buffered x in + double-buffered out + bias/alpha slack.
        return (w_vmem + 4 * tb * D * x_itemsize + 32 * D) <= int(0.7 * vmem_cap)

    tb_a = tile_b
    resident = (not force_tiled) and (w_vmem <= int(0.6 * vmem_cap))
    if resident and not _fits_resident(tb_a):
        resident = False
        for cand in (256, 128, 64, 32):
            cand = _round_up(cand, sub)
            if cand < tb_a and _fits_resident(cand):
                tb_a = cand
                resident = True
                break

    if resident:
        footprint = w_vmem + 4 * tb_a * D * x_itemsize + 32 * D
        vmem_limit = int(min(int(0.9 * vmem_cap),
                             max(footprint + 4 * _MIB, 32 * _MIB)))
        nb = _cdiv(B, tb_a)
        return pl.pallas_call(
            _rezero_resident_kernel,
            out_shape=jax.ShapeDtypeStruct((B, D), x.dtype),
            grid_spec=pltpu.PrefetchScalarGridSpec(
                num_scalar_prefetch=0,
                grid=(nb,),
                in_specs=[
                    pl.BlockSpec((tb_a, D), lambda i: (i, 0)),   # x (matmul + residual)
                    pl.BlockSpec((D, D), lambda i: (0, 0)),      # W^T, DMA'd once, resident
                    pl.BlockSpec((1, D), lambda i: (0, 0)),      # bias
                    pl.BlockSpec((1, D), lambda i: (0, 0)),      # alpha
                ],
                out_specs=pl.BlockSpec((tb_a, D), lambda i: (i, 0)),
            ),
            compiler_params=pltpu.CompilerParams(
                dimension_semantics=("parallel",),
                vmem_limit_bytes=vmem_limit),
        )(x, w_t, b2, alpha)

    # ------------------- Path B: tiled GEMM + fused epilogue -------------------
    Dp = _round_up(D, 128)
    if Dp != D:
        # Only the feature dim is padded (zeros => padded outputs are exactly 0
        # and sliced off).  The ragged batch is handled by masked edge blocks.
        x_p = jnp.pad(x, ((0, 0), (0, Dp - D)))
        w_p = jnp.pad(w_t, ((0, Dp - D), (0, Dp - D)))
        b_p = jnp.pad(b2, ((0, 0), (0, Dp - D)))
        a_p = jnp.pad(alpha, ((0, 0), (0, Dp - D)))
    else:
        x_p, w_p, b_p, a_p = x, w_t, b2, alpha

    tn = 512 if Dp % 512 == 0 else (256 if Dp % 256 == 0 else 128)
    tk = 512 if Dp % 512 == 0 else (256 if Dp % 256 == 0 else 128)

    footprint_b = (2 * tile_b * tk * x_itemsize       # x (matmul view)
                   + 2 * tile_b * tn * x_itemsize     # x (residual view)
                   + 2 * tk * tn * w_itemsize         # W tile
                   + 2 * tile_b * tn * x_itemsize     # out
                   + tile_b * tn * 4                  # f32 accumulator
                   + 32 * tn)
    vmem_limit = int(min(int(0.9 * vmem_cap),
                         max(footprint_b + 4 * _MIB, 32 * _MIB)))

    nb = _cdiv(B, tile_b)
    grid = (nb, Dp // tn, Dp // tk)

    out = pl.pallas_call(
        _rezero_tiled_kernel,
        out_shape=jax.ShapeDtypeStruct((B, Dp), x.dtype),
        grid_spec=pltpu.PrefetchScalarGridSpec(
            num_scalar_prefetch=0,
            grid=grid,
            in_specs=[
                pl.BlockSpec((tile_b, tk), lambda i, j, k: (i, k)),  # x (matmul)
                pl.BlockSpec((tile_b, tn), lambda i, j, k: (i, j)),  # x (residual)
                pl.BlockSpec((tk, tn), lambda i, j, k: (k, j)),      # W^T (in, out)
                pl.BlockSpec((1, tn), lambda i, j, k: (0, j)),       # bias
                pl.BlockSpec((1, tn), lambda i, j, k: (0, j)),       # alpha
            ],
            out_specs=pl.BlockSpec((tile_b, tn), lambda i, j, k: (i, j)),
            scratch_shapes=[pltpu.VMEM((tile_b, tn), jnp.float32)],
        ),
        compiler_params=pltpu.CompilerParams(
            dimension_semantics=("parallel", "parallel", "arbitrary"),
            vmem_limit_bytes=vmem_limit),
    )(x_p, x_p, w_p, b_p, a_p)

    if Dp != D:
        out = out[:, :D]
    return out


def rezero_reference(x, w, b, alpha):
    y = x @ w.T + b
    y = jnp.where(y >= 0, y, 0.01 * y)
    return y * alpha + x


if __name__ == "__main__":
    key = jax.random.PRNGKey(0)
    k_x, k_w, k_b, k_a = jax.random.split(key, 4)

    batch, ndim = 16, 32

    x = jax.random.normal(k_x, (batch, ndim), dtype=jnp.float32)
    # nn.Linear default init: U(-1/sqrt(ndim), 1/sqrt(ndim))
    bound = 1.0 / (ndim ** 0.5)
    w = jax.random.uniform(k_w, (ndim, ndim), minval=-bound, maxval=bound,
                           dtype=jnp.float32)
    b = jax.random.uniform(k_b, (ndim,), minval=-bound, maxval=bound,
                           dtype=jnp.float32)

    # 1) Module init state: alpha == 0 (output must equal x exactly).
    alpha0 = jnp.zeros((1, ndim), dtype=jnp.float32)
    out0 = jax.block_until_ready(rezero_block(x, w, b, alpha0))
    ref0 = rezero_reference(x, w, b, alpha0)
    assert out0.shape == (batch, ndim)
    assert jnp.allclose(out0, ref0, atol=1e-4, rtol=1e-4)

    # 2) "Trained" state: nonzero alpha — resident-weight fast path.
    alpha1 = 0.1 * jax.random.normal(k_a, (1, ndim), dtype=jnp.float32)
    out1 = jax.block_until_ready(rezero_block(x, w, b, alpha1))
    ref1 = rezero_reference(x, w, b, alpha1)
    assert jnp.allclose(out1, ref1, atol=1e-4, rtol=1e-4)

    # 3) Tiled fallback path (used automatically when W exceeds the VMEM budget);
    #    exercised here at small shape to keep it compile-clean.
    out2 = jax.block_until_ready(rezero_block(x, w, b, alpha1, force_tiled=True))
    assert jnp.allclose(out2, ref1, atol=1e-4, rtol=1e-4)

    print("KERNEL_OK")
</pallas_src>

<mosaic_0001>
module attributes {stable_mosaic.version = 11 : i64} {
  func.func @_rezero_resident_kernel(%arg0: i32, %arg1: memref<16x32xf32, #tpu.memory_space<vmem>>, %arg2: memref<32x32xf32, #tpu.memory_space<vmem>>, %arg3: memref<1x32xf32, #tpu.memory_space<vmem>>, %arg4: memref<1x32xf32, #tpu.memory_space<vmem>>, %arg5: memref<16x32xf32, #tpu.memory_space<vmem>>) attributes {dimension_semantics = [#tpu.dimension_semantics<parallel>], iteration_bounds = array<i64: 1>, scalar_prefetch = 0 : i64, scratch_operands = 0 : i64, tpu.core_type = #tpu.core_type<tc>, window_params = [{transform_indices = @transform_0, window_bounds = array<i64: 16, 32>}, {pipeline_mode = #tpu.pipeline_mode<synchronous>, transform_indices = @transform_1, window_bounds = array<i64: 32, 32>}, {pipeline_mode = #tpu.pipeline_mode<synchronous>, transform_indices = @transform_2, window_bounds = array<i64: 1, 32>}, {pipeline_mode = #tpu.pipeline_mode<synchronous>, transform_indices = @transform_3, window_bounds = array<i64: 1, 32>}, {transform_indices = @transform_4, window_bounds = array<i64: 16, 32>}]} {
    %c0 = arith.constant 0 : index
    %c0_0 = arith.constant 0 : index
    %0 = vector.load %arg1[%c0, %c0_0] : memref<16x32xf32, #tpu.memory_space<vmem>>, vector<16x32xf32>
    %c0_1 = arith.constant 0 : index
    %c0_2 = arith.constant 0 : index
    %1 = vector.load %arg2[%c0_1, %c0_2] : memref<32x32xf32, #tpu.memory_space<vmem>>, vector<32x32xf32>
    %cst = arith.constant dense<0.000000e+00> : vector<16x32xf32>
    %2 = tpu.matmul %0, %1, %cst {dimension_numbers = #tpu.dot_dimension_numbers<[1], [0], [0], [1], [0, 0, 1, 1], [], []>} : vector<16x32xf32>, vector<32x32xf32>, vector<16x32xf32> -> vector<16x32xf32>
    %c0_3 = arith.constant 0 : index
    %c0_4 = arith.constant 0 : index
    %3 = vector.load %arg3[%c0_3, %c0_4] : memref<1x32xf32, #tpu.memory_space<vmem>>, vector<1x32xf32>
    %4 = vector.broadcast %3 : vector<1x32xf32> to vector<16x32xf32>
    %5 = arith.addf %2, %4 : vector<16x32xf32>
    %cst_5 = arith.constant 0.00999999977 : f32
    %6 = vector.broadcast %cst_5 : f32 to vector<16x32xf32>
    %7 = arith.mulf %6, %5 : vector<16x32xf32>
    %8 = arith.maximumf %5, %7 : vector<16x32xf32>
    %c0_6 = arith.constant 0 : index
    %c0_7 = arith.constant 0 : index
    %9 = vector.load %arg4[%c0_6, %c0_7] : memref<1x32xf32, #tpu.memory_space<vmem>>, vector<1x32xf32>
    %10 = vector.broadcast %9 : vector<1x32xf32> to vector<16x32xf32>
    %11 = arith.mulf %8, %10 : vector<16x32xf32>
    %12 = arith.addf %11, %0 : vector<16x32xf32>
    %c0_8 = arith.constant 0 : index
    %c0_9 = arith.constant 0 : index
    %13 = vector.load %arg5[%c0_8, %c0_9] : memref<16x32xf32, #tpu.memory_space<vmem>>, vector<16x32xf32>
    tpu.vector_store %arg5[%c0_8, %c0_9], %12 {strides = array<i32>} : memref<16x32xf32, #tpu.memory_space<vmem>>, vector<16x32xf32>,
    return
  }
  func.func @transform_0(%arg0: i32) -> (i32, i32) {
    %c0_i32 = arith.constant 0 : i32
    %c0_i32_0 = arith.constant 0 : i32
    return %arg0, %c0_i32 : i32, i32
  }
  func.func @transform_1(%arg0: i32) -> (i32, i32) {
    %c0_i32 = arith.constant 0 : i32
    %c0_i32_0 = arith.constant 0 : i32
    %c0_i32_1 = arith.constant 0 : i32
    return %c0_i32, %c0_i32_0 : i32, i32
  }
  func.func @transform_2(%arg0: i32) -> (i32, i32) {
    %c0_i32 = arith.constant 0 : i32
    %c0_i32_0 = arith.constant 0 : i32
    %c0_i32_1 = arith.constant 0 : i32
    return %c0_i32, %c0_i32_0 : i32, i32
  }
  func.func @transform_3(%arg0: i32) -> (i32, i32) {
    %c0_i32 = arith.constant 0 : i32
    %c0_i32_0 = arith.constant 0 : i32
    %c0_i32_1 = arith.constant 0 : i32
    return %c0_i32, %c0_i32_0 : i32, i32
  }
  func.func @transform_4(%arg0: i32) -> (i32, i32) {
    %c0_i32 = arith.constant 0 : i32
    %c0_i32_0 = arith.constant 0 : i32
    return %arg0, %c0_i32 : i32, i32
  }
}

</mosaic_0001>

<llo_original>
// kernel: tpu_custom_call.1
$region0: #{tpu_custom_call.1}
  #allocation0 [shape = 'u32[]', space=smem, size = 0x4, offset = 0x4, fixed_abs, tag = 'smem constant byte address 0x4 - core index']
  #allocation1 [shape = 'u32[144,128]{1,0:T(1,128)}', space=vmem, size = 0x12000, scoped, tag = 'internal scratch']
  %s0 = inlined_call_operand.hbm [shape: f32[16,32], index: 0, kind: input, shape index: {}]
  %s1 = inlined_call_operand.hbm [shape: f32[32,32], index: 1, kind: input, shape index: {}]
  %s2 = inlined_call_operand.vmem [shape: f32[1,32], index: 2, kind: input, shape index: {}]
  %s3 = inlined_call_operand.vmem [shape: f32[1,32], index: 3, kind: input, shape index: {}]
  %s4 = inlined_call_operand.hbm [shape: f32[16,32], index: 4, kind: output, shape index: {}]
  %s5 = sld [smem:[#allocation0]]
  $region34: #{tpu_custom_call.1} parent=0
    _
  %s7 = ssub.s32 1, %s5
  %s8 = scalar_select 0, %s7, %s5
  $region1: #{tpu_custom_call.1} parent=0
    #allocation2 [shape = 'u8[8192]{0}', space=vmem, size = 0x2000, scoped, tag = 'input window, operand 0, single buffered']
    #allocation3 [shape = 's32[1]{0}', space=sflag, size = 0x4, scoped, tag = 'scoped memory for tpu_custom_call.1']
    #allocation4 [shape = 's32[1]{0}', space=sflag, size = 0x4, scoped, tag = 'scoped memory for tpu_custom_call.1']
    #allocation5 [shape = 'u8[16384]{0}', space=vmem, size = 0x4000, scoped, tag = 'input window, operand 1, single buffered']
    #allocation6 [shape = 's32[1]{0}', space=sflag, size = 0x4, scoped, tag = 'scoped memory for tpu_custom_call.1']
    #allocation7 [shape = 'u8[8192]{0}', space=vmem, size = 0x2000, scoped, tag = 'output window, operand 0, single buffered']
    %9 = vsyncpa [#allocation3], 0
    %10 = vsyncpa [#allocation6], 0
    %11 = vsyncpa [#allocation4], 0
    // Predicated region
    $region2: #{tpu_custom_call.1} parent=1 // pred_check
      _
    $region3: #{tpu_custom_call.1} parent=1 // pred_check_branch
      %13 = sbr.rel (0) target = $region5
    $region4: #{tpu_custom_call.1} parent=1 // pred_region
      %s15 = ssub.s32 256, 256
      %16 = vsyncadd [#allocation3], %s15
      %s17 = sshll.u32 [#allocation2], 4
      %s18 = int_to_ptr.vmem [resolvable:$true] %s17
      %23 = dma.hbm_to_vmem [thread:$0]  %s0, 256, %s18, [#allocation3], 128, 128, 8
    $region5: #{tpu_custom_call.1} parent=1 // pred_fallthru
      _
    // Predicated region
    $region6: #{tpu_custom_call.1} parent=1 // pred_check
      _
    $region7: #{tpu_custom_call.1} parent=1 // pred_check_branch
      %25 = sbr.rel (0) target = $region9
    $region8: #{tpu_custom_call.1} parent=1 // pred_region
      %s27 = ssub.s32 512, 512
      %28 = vsyncadd [#allocation6], %s27
      %s29 = sshll.u32 [#allocation5], 4
      %s30 = int_to_ptr.vmem [resolvable:$true] %s29
      %35 = dma.hbm_to_vmem [thread:$0]  %s1, 512, %s30, [#allocation6], 128, 128, 8
    $region9: #{tpu_custom_call.1} parent=1 // pred_fallthru
      _
    // Predicated region
    $region10: #{tpu_custom_call.1} parent=1 // pred_check
      _
    $region11: #{tpu_custom_call.1} parent=1 // pred_check_branch
      %37 = sbr.rel (0) target = $region13
    $region12: #{tpu_custom_call.1} parent=1 // pred_region
      _
    $region13: #{tpu_custom_call.1} parent=1 // pred_fallthru
      _
    // Predicated region
    $region14: #{tpu_custom_call.1} parent=1 // pred_check
      _
    $region15: #{tpu_custom_call.1} parent=1 // pred_check_branch
      %39 = sbr.rel (0) target = $region17
    $region16: #{tpu_custom_call.1} parent=1 // pred_region
      _
    $region17: #{tpu_custom_call.1} parent=1 // pred_fallthru
      _
    // Predicated region
    $region18: #{tpu_custom_call.1} parent=1 // pred_check
      _
    $region19: #{tpu_custom_call.1} parent=1 // pred_check_branch
      %41 = sbr.rel (0) target = $region21
    $region20: #{tpu_custom_call.1} parent=1 // pred_region
      %42 = dma.done [#allocation3], 256
    $region21: #{tpu_custom_call.1} parent=1 // pred_fallthru
      _
    // Predicated region
    $region22: #{tpu_custom_call.1} parent=1 // pred_check
      _
    $region23: #{tpu_custom_call.1} parent=1 // pred_check_branch
      %44 = sbr.rel (0) target = $region25
    $region24: #{tpu_custom_call.1} parent=1 // pred_region
      %45 = dma.done [#allocation6], 512
    $region25: #{tpu_custom_call.1} parent=1 // pred_fallthru
      _
    %v46 = vld [vmem:[#allocation2] sm:$0xff]
    %v47 = vld [vmem:[#allocation2 + $0x8] sm:$0xff]
    %v48 = vld [vmem:[#allocation5] sm:$0xff]
    %v49 = vld [vmem:[#allocation5 + $0x8] sm:$0xff]
    %v50 = vld [vmem:[#allocation5 + $0x10] sm:$0xff]
    %v51 = vld [vmem:[#allocation5 + $0x18] sm:$0xff]
    %v52 = vld [vmem:[%s2] sm:$0x1]
    %v54 = vlaneseq
    %v55 = vshrl.u32 %v54, 7
    %v56 = vsub.s32 0, %v55
    %v57 = vrot.slane %v52, %v56
    %vm59 = vcmask 261120
    %v61 = vsel %vm59, %v46, 0
    %v64 = vsel %vm59, %v47, 0
    %66 = vmatprep.subr.mxu0 0.0
    %67 = vmatpush1.msra.mxu0 %v48
    %68 = vmatprep.subr.mxu0 0.0
    %69 = vmatpush1.msra.mxu0 %v49
    %70 = vmatprep.subr.mxu0 0.0
    %71 = vmatpush1.msra.mxu0 %v50
    %72 = vmatprep.subr.mxu0 0.0
    %73 = vmatpush1.msra.mxu0 %v51
    %74 = vmatprep.subr.mxu0 0.0
    %75 = vmatpush1.msra.mxu0 0.0
    %76 = vmatprep.subr.mxu0 0.0
    %77 = vmatpush1.msra.mxu0 0.0
    %78 = vmatprep.subr.mxu0 0.0
    %79 = vmatpush1.msra.mxu0 0.0
    %80 = vmatprep.subr.mxu0 0.0
    %81 = vmatpush1.msra.mxu0 0.0
    %82 = vmatprep.subr.mxu0 0.0
    %83 = vmatpush1.msra.mxu0 0.0
    %84 = vmatprep.subr.mxu0 0.0
    %85 = vmatpush1.msra.mxu0 0.0
    %86 = vmatprep.subr.mxu0 0.0
    %87 = vmatpush1.msra.mxu0 0.0
    %88 = vmatprep.subr.mxu0 0.0
    %89 = vmatpush1.msra.mxu0 0.0
    %90 = vmatprep.subr.mxu0 0.0
    %91 = vmatpush1.msra.mxu0 0.0
    %92 = vmatprep.subr.mxu0 0.0
    %93 = vmatpush1.msra.mxu0 0.0
    %94 = vmatprep.subr.mxu0 0.0
    %95 = vmatpush1.msra.mxu0 0.0
    %96 = vmatprep.subr.mxu0 0.0
    %97 = vmatpush1.msra.mxu0 0.0
    %98 = vmatprep.subr.mxu0 0.0
    %99 = vmatpush1.msra.mxu0 0.0
    %100 = vmatprep.subr.mxu0 0.0
    %101 = vmatpush1.msra.mxu0 0.0
    %102 = vmatprep.subr.mxu0 0.0
    %103 = vmatpush1.msra.mxu0 0.0
    %104 = vmatprep.subr.mxu0 0.0
    %105 = vmatpush1.msra.mxu0 0.0
    %106 = vmatprep.subr.mxu0 0.0
    %107 = vmatpush1.msra.mxu0 0.0
    %108 = vmatprep.subr.mxu0 0.0
    %109 = vmatpush1.msra.mxu0 0.0
    %110 = vmatprep.subr.mxu0 0.0
    %111 = vmatpush1.msra.mxu0 0.0
    %112 = vmatprep.subr.mxu0 0.0
    %113 = vmatpush1.msra.mxu0 0.0
    %114 = vmatprep.subr.mxu0 0.0
    %115 = vmatpush1.msra.mxu0 0.0
    %116 = vmatprep.subr.mxu0 0.0
    %117 = vmatpush1.msra.mxu0 0.0
    %118 = vmatprep.subr.mxu0 0.0
    %119 = vmatpush1.msra.mxu0 0.0
    %120 = vmatprep.subr.mxu0 0.0
    %121 = vmatpush1.msra.mxu0 0.0
    %122 = vmatprep.subr.mxu0 0.0
    %123 = vmatpush1.msra.mxu0 0.0
    %124 = vmatprep.subr.mxu0 0.0
    %125 = vmatpush1.msra.mxu0 0.0
    %126 = vmatprep.subr.mxu0 0.0
    %127 = vmatpush1.msra.mxu0 0.0
    %128 = vmatprep.subr.mxu0 0.0
    %129 = vmatpush1.msra.mxu0 0.0
    %130 = vmatprep.mubr.f32.mxu0 0.0
    %131 = vmatmul.mubr.f32.gmra.mrb[0].mxu0 %v61
    %v132 = vpop.f32.mrb[0].mxu0
    %v133 = vadd.f32 %v57, %v132
    %v134 = vpop.f32.mrb[0].mxu0
    %135 = vmatprep.mubr.f32.mxu0 0.0
    %136 = vmatmul.mubr.f32.gmra.mrb[0].mxu0 %v64
    %v137 = vpop.f32.mrb[0].mxu0
    %v138 = vadd.f32 %v57, %v137
    %v139 = vpop.f32.mrb[0].mxu0
    %140 = vdwg.mxu0
    %v141 = vmul.f32 %v133, 0.01
    %v142 = vmul.f32 %v138, 0.01
    %v143 = vmax.f32 %v133, %v141
    %v144 = vmax.f32 %v138, %v142
    %v145 = vld [vmem:[%s3] sm:$0x1]
    %v147 = vlaneseq
    %v148 = vshrl.u32 %v147, 7
    %v149 = vsub.s32 0, %v148
    %v150 = vrot.slane %v145, %v149
    %v152 = vmul.f32 %v143, %v150
    %v153 = vmul.f32 %v144, %v150
    %v154 = vadd.f32 %v152, %v46
    %v155 = vadd.f32 %v153, %v47
    %156 = vst.msk [vmem:[#allocation7] sm:$0xff] %vm59, %v154
    %157 = vst.msk [vmem:[#allocation7 + $0x8] sm:$0xff] %vm59, %v155
    // Predicated region
    $region26: #{tpu_custom_call.1} parent=1 // pred_check
      _
    $region27: #{tpu_custom_call.1} parent=1 // pred_check_branch
      %159 = sbr.rel (0) target = $region29
    $region28: #{tpu_custom_call.1} parent=1 // pred_region
      %s161 = ssub.s32 256, 256
      %162 = vsyncadd [#allocation4], %s161
      %s163 = sshll.u32 [#allocation7], 4
      %s164 = int_to_ptr.vmem [resolvable:$true] %s163
      %169 = dma.vmem_to_hbm [thread:$0]  %s164, 256, %s4, [#allocation4], 128, 128, 8
    $region29: #{tpu_custom_call.1} parent=1 // pred_fallthru
      _
    // Predicated region
    $region30: #{tpu_custom_call.1} parent=1 // pred_check
      _
    $region31: #{tpu_custom_call.1} parent=1 // pred_check_branch
      %171 = sbr.rel (0) target = $region33
    $region32: #{tpu_custom_call.1} parent=1 // pred_region
      %172 = dma.done [#allocation4], 256
    $region33: #{tpu_custom_call.1} parent=1 // pred_fallthru
      _
    %173 = vsyncpa [#allocation3], 1
    %174 = vsyncpa [#allocation6], 1
    %175 = vsyncpa [#allocation4], 1

</llo_original>
